<compile_context>
chip_gen: v7x
topology: tpu7x:2x2x1
jax: 0.10.0
libtpu: 0.0.40
codegen_flags: <defaults>
</compile_context>

<pallas_src>
from functools import lru_cache, partial

import jax
import jax.numpy as jnp
from jax.experimental import pallas as pl
from jax.experimental.pallas import tpu as pltpu


def _round_up(a, b):
    return (a + b - 1) // b * b


@lru_cache(maxsize=1)
def _vmem_capacity_bytes():
    try:
        cap = getattr(pltpu.get_tpu_info(), "vmem_capacity_bytes", None)
        if cap:
            return int(cap)
    except Exception:
        pass
    return 64 * 1024 * 1024          # conservative fallback (v7x per-TC VMEM)


@lru_cache(maxsize=1)
def _buffered_one_ok():
    """Probe once whether pipeline_mode=pl.Buffered(1) works for resident blocks."""
    try:
        def k(x_ref, w_ref, o_ref):
            o_ref[...] = x_ref[...] + w_ref[...]
        fn = pl.pallas_call(
            k,
            out_shape=jax.ShapeDtypeStruct((16, 128), jnp.float32),
            grid=(2,),
            in_specs=[
                pl.BlockSpec((8, 128), lambda i: (i, 0)),
                pl.BlockSpec((8, 128), lambda i: (0, 0), pipeline_mode=pl.Buffered(1)),
            ],
            out_specs=pl.BlockSpec((8, 128), lambda i: (i, 0)),
        )
        jax.block_until_ready(fn(jnp.zeros((16, 128), jnp.float32),
                                 jnp.ones((8, 128), jnp.float32)))
        return True
    except Exception:
        return False


def _choose_tile_dout(dout_pad, in_dim, w_bytes, target_bytes):
    """Largest multiple-of-128 divisor of dout_pad whose weight block fits target."""
    if in_dim * dout_pad * w_bytes <= target_bytes:
        return dout_pad
    m = dout_pad // 128
    for d in range(m, 0, -1):
        if m % d == 0 and in_dim * d * 128 * w_bytes <= target_bytes:
            return d * 128
    return 128


def _perm_equi2_mean_kernel(x_ref, wg_t_ref, beff_ref, o_ref):
    # x_ref:    (TILE_N, Din)          compute dtype (e.g. bf16)
    # wg_t_ref: (Din, TILE_DOUT)       compute dtype (lane-padded Gamma weight^T)
    # beff_ref: (1, TILE_DOUT)         f32 = Gamma.bias - Lambda(mean(x))
    # o_ref:    (TILE_N, out block)    out block width <= TILE_DOUT
    acc = jnp.dot(x_ref[...], wg_t_ref[...], preferred_element_type=jnp.float32)
    out = acc + beff_ref[...]
    dout = o_ref.shape[-1]
    o_ref[...] = out[:, :dout].astype(o_ref.dtype)


def prepare_perm_equi2_mean_params(gamma_weight, gamma_bias, lambda_weight,
                                   *, compute_dtype=jnp.bfloat16):
    """One-time parameter prep (hoisted off the per-call path).

    gamma_weight / lambda_weight: (out_dim, in_dim) torch nn.Linear layout.
    gamma_bias: (out_dim,).
    """
    out_dim, in_dim = gamma_weight.shape
    dout_pad = _round_up(out_dim, 128)              # lane-aligned MXU operand

    wg_t = jnp.zeros((in_dim, dout_pad), compute_dtype)
    wg_t = wg_t.at[:, :out_dim].set(jnp.transpose(gamma_weight).astype(compute_dtype))

    wl_t = jnp.zeros((in_dim, dout_pad), jnp.float32)       # only used in a tiny GEMV
    wl_t = wl_t.at[:, :out_dim].set(jnp.transpose(lambda_weight).astype(jnp.float32))

    bg = jnp.zeros((1, dout_pad), jnp.float32)
    bg = bg.at[0, :out_dim].set(gamma_bias.astype(jnp.float32))

    return dict(wg_t=wg_t, wl_t_f32=wl_t, bg_f32=bg,
                in_dim=in_dim, out_dim=out_dim, dout_pad=dout_pad)


@partial(jax.jit, static_argnames=("out_dim", "tile_n_req", "buffered_one_ok",
                                   "dout_block_target_bytes"))
def _perm_equi2_mean_impl(x, wg_t, wl_t_f32, bg_f32, *, out_dim, tile_n_req,
                          buffered_one_ok, dout_block_target_bytes):
    n, in_dim = x.shape
    dout_pad = wg_t.shape[1]

    # ---- fold Lambda(mean(x)) into the bias (f32); fuses with the call under jit ----
    xm = jnp.mean(x.astype(jnp.float32), axis=0, keepdims=True)            # (1, Din)
    b_eff = bg_f32 - xm @ wl_t_f32                                          # (1, Dout_pad)

    x_b = jnp.dtype(x.dtype).itemsize
    w_b = jnp.dtype(wg_t.dtype).itemsize
    o_b = x_b

    vmem_cap = _vmem_capacity_bytes()
    budget = (vmem_cap * 3) // 4                 # ~48 MiB v7x, ~96 MiB v5e/v6e

    # ---- block Dout only when the weight would eat too much VMEM ----
    w_target = dout_block_target_bytes if dout_block_target_bytes else budget // 4
    tile_dout = _choose_tile_dout(dout_pad, in_dim, w_b, w_target)
    dout_blocks = dout_pad // tile_dout
    weight_resident = dout_blocks == 1                    # constant index map
    weight_bufs = 1 if (weight_resident and buffered_one_ok) else 2
    out_block_w = out_dim if dout_blocks == 1 else tile_dout

    def footprint(tn):
        return (2 * tn * in_dim * x_b                     # double-buffered x tiles
                + weight_bufs * in_dim * tile_dout * w_b  # weight block(s)
                + 2 * dout_pad * 4                        # folded bias (tiny)
                + 2 * tn * out_block_w * o_b)             # double-buffered out tiles

    # ---- TILE_N: full extent for small N; else >= 2 grid steps, sized to VMEM ----
    n_pad8 = _round_up(n, 8)
    if n_pad8 < 128:
        tile_n = n                                        # full-extent block (always legal)
    else:
        cap = max(64, _round_up(pl.cdiv(n_pad8, 2), 64))  # >=2 steps -> v7x megacore
        tile_n = max(64, min(_round_up(tile_n_req, 64), cap))
        while tile_n > 64 and footprint(tile_n) > budget:
            tile_n = max(64, _round_up(tile_n // 2, 64))
    n_blocks = pl.cdiv(n, tile_n)

    vmem_limit = int(min(max(footprint(tile_n) + (4 << 20), 32 << 20),
                         (vmem_cap * 9) // 10))

    def spec(shape, index_map, resident=False):
        if resident and buffered_one_ok:
            return pl.BlockSpec(shape, index_map, pipeline_mode=pl.Buffered(1))
        return pl.BlockSpec(shape, index_map)

    if dout_blocks == 1:
        grid = (n_blocks,)
        in_specs = [
            spec((tile_n, in_dim), lambda i: (i, 0)),
            spec((in_dim, dout_pad), lambda i: (0, 0), resident=True),
            spec((1, dout_pad), lambda i: (0, 0), resident=True),
        ]
        out_specs = pl.BlockSpec((tile_n, out_dim), lambda i: (i, 0))
        semantics = ("parallel",)
    else:
        # Dout outer, N inner: the big weight block stays resident over the inner loop.
        grid = (dout_blocks, n_blocks)
        in_specs = [
            pl.BlockSpec((tile_n, in_dim), lambda j, i: (i, 0)),
            pl.BlockSpec((in_dim, tile_dout), lambda j, i: (0, j)),
            pl.BlockSpec((1, tile_dout), lambda j, i: (0, j)),
        ]
        out_specs = pl.BlockSpec((tile_n, tile_dout), lambda j, i: (i, j))
        semantics = ("parallel", "parallel")

    cost = pl.CostEstimate(
        flops=2 * n * in_dim * dout_pad,
        transcendentals=0,
        bytes_accessed=(dout_blocks * n * in_dim * x_b
                        + in_dim * dout_pad * w_b
                        + n * out_dim * o_b))

    return pl.pallas_call(
        _perm_equi2_mean_kernel,
        out_shape=jax.ShapeDtypeStruct((n, out_dim), x.dtype),
        grid=grid,
        in_specs=in_specs,
        out_specs=out_specs,
        compiler_params=pltpu.CompilerParams(
            dimension_semantics=semantics,
            vmem_limit_bytes=vmem_limit),
        cost_estimate=cost,
    )(x, wg_t, b_eff)


def perm_equi2_mean(x, params, *, tile_n=512, dout_block_target_bytes=None):
    """x: (N, in_dim) -> (N, out_dim). x's dtype (bf16 recommended) feeds the MXU."""
    assert x.shape[1] == params["in_dim"]
    return _perm_equi2_mean_impl(
        x, params["wg_t"], params["wl_t_f32"], params["bg_f32"],
        out_dim=params["out_dim"], tile_n_req=int(tile_n),
        buffered_one_ok=_buffered_one_ok(),
        dout_block_target_bytes=dout_block_target_bytes)


if __name__ == "__main__":
    root = jax.random.PRNGKey(0)

    def make_case(key, n, in_dim, out_dim):
        k_x, k_wg, k_bg, k_wl = jax.random.split(key, 4)
        x = jax.random.normal(k_x, (n, in_dim), jnp.float32).astype(jnp.bfloat16)
        bound = 1.0 / (in_dim ** 0.5)
        gw = jax.random.uniform(k_wg, (out_dim, in_dim), jnp.float32, -bound, bound)
        gb = jax.random.uniform(k_bg, (out_dim,), jnp.float32, -bound, bound)
        lw = jax.random.uniform(k_wl, (out_dim, in_dim), jnp.float32, -bound, bound)
        return x, gw, gb, lw

    def reference(x, gw, gb, lw):
        xf = x.astype(jnp.float32)
        wg = gw.astype(jnp.bfloat16).astype(jnp.float32)   # values the MXU sees
        xm = jnp.mean(xf, axis=0, keepdims=True)
        return (xf @ wg.T + gb) - (xm @ lw.T)

    def check(x, gw, gb, lw, **kw):
        params = prepare_perm_equi2_mean_params(gw, gb, lw, compute_dtype=jnp.bfloat16)
        out = jax.block_until_ready(perm_equi2_mean(x, params, **kw))
        ref = reference(x, gw, gb, lw)
        assert out.shape == ref.shape
        assert out.dtype == x.dtype
        err = float(jnp.max(jnp.abs(out.astype(jnp.float32) - ref)))
        assert jnp.allclose(out.astype(jnp.float32), ref, atol=2e-2, rtol=2e-2), err

    k0, k1, k2 = jax.random.split(root, 3)
    # Module-typical small shape: set size 8, square 32->32 layer.
    check(*make_case(k0, 8, 32, 32))
    # Ragged row grid (2 parallel steps) + non-multiple-of-128 out_dim (masked store).
    check(*make_case(k1, 200, 64, 96))
    # Force the Dout-blocked (2-D grid) path on a tiny problem for path coverage.
    check(*make_case(k2, 16, 32, 160), dout_block_target_bytes=8 * 1024)

    print("KERNEL_OK")
</pallas_src>

<mosaic_0001>
module attributes {stable_mosaic.version = 11 : i64} {
  func.func @k(%arg0: i32, %arg1: memref<8x128xf32, #tpu.memory_space<vmem>>, %arg2: memref<8x128xf32, #tpu.memory_space<vmem>>, %arg3: memref<8x128xf32, #tpu.memory_space<vmem>>) attributes {dimension_semantics = [#tpu.dimension_semantics<arbitrary>], iteration_bounds = array<i64: 2>, scalar_prefetch = 0 : i64, scratch_operands = 0 : i64, tpu.core_type = #tpu.core_type<tc>, window_params = [{transform_indices = @transform_0, window_bounds = array<i64: 8, 128>}, {pipeline_mode = #tpu.pipeline_mode<synchronous>, transform_indices = @transform_1, window_bounds = array<i64: 8, 128>}, {transform_indices = @transform_2, window_bounds = array<i64: 8, 128>}]} {
    %c0 = arith.constant 0 : index
    %c0_0 = arith.constant 0 : index
    %0 = vector.load %arg1[%c0, %c0_0] : memref<8x128xf32, #tpu.memory_space<vmem>>, vector<8x128xf32>
    %c0_1 = arith.constant 0 : index
    %c0_2 = arith.constant 0 : index
    %1 = vector.load %arg2[%c0_1, %c0_2] : memref<8x128xf32, #tpu.memory_space<vmem>>, vector<8x128xf32>
    %2 = arith.addf %0, %1 : vector<8x128xf32>
    %c0_3 = arith.constant 0 : index
    %c0_4 = arith.constant 0 : index
    %3 = vector.load %arg3[%c0_3, %c0_4] : memref<8x128xf32, #tpu.memory_space<vmem>>, vector<8x128xf32>
    tpu.vector_store %arg3[%c0_3, %c0_4], %2 {strides = array<i32>} : memref<8x128xf32, #tpu.memory_space<vmem>>, vector<8x128xf32>,
    return
  }
  func.func @transform_0(%arg0: i32) -> (i32, i32) {
    %c0_i32 = arith.constant 0 : i32
    %c0_i32_0 = arith.constant 0 : i32
    return %arg0, %c0_i32 : i32, i32
  }
  func.func @transform_1(%arg0: i32) -> (i32, i32) {
    %c0_i32 = arith.constant 0 : i32
    %c0_i32_0 = arith.constant 0 : i32
    %c0_i32_1 = arith.constant 0 : i32
    return %c0_i32, %c0_i32_0 : i32, i32
  }
  func.func @transform_2(%arg0: i32) -> (i32, i32) {
    %c0_i32 = arith.constant 0 : i32
    %c0_i32_0 = arith.constant 0 : i32
    return %arg0, %c0_i32 : i32, i32
  }
}

module attributes {stable_mosaic.version = 11 : i64} {
  func.func @_perm_equi2_mean_kernel(%arg0: i32, %arg1: memref<8x32xbf16, #tpu.memory_space<vmem>>, %arg2: memref<32x128xbf16, #tpu.memory_space<vmem>>, %arg3: memref<1x128xf32, #tpu.memory_space<vmem>>, %arg4: memref<8x32xbf16, #tpu.memory_space<vmem>>) attributes {dimension_semantics = [#tpu.dimension_semantics<parallel>], iteration_bounds = array<i64: 1>, scalar_prefetch = 0 : i64, scratch_operands = 0 : i64, tpu.core_type = #tpu.core_type<tc>, window_params = [{transform_indices = @transform_0, window_bounds = array<i64: 8, 32>}, {pipeline_mode = #tpu.pipeline_mode<synchronous>, transform_indices = @transform_1, window_bounds = array<i64: 32, 128>}, {pipeline_mode = #tpu.pipeline_mode<synchronous>, transform_indices = @transform_2, window_bounds = array<i64: 1, 128>}, {transform_indices = @transform_3, window_bounds = array<i64: 8, 32>}]} {
    %c0 = arith.constant 0 : index
    %c0_0 = arith.constant 0 : index
    %0 = vector.load %arg1[%c0, %c0_0] : memref<8x32xbf16, #tpu.memory_space<vmem>>, vector<8x32xbf16>
    %c0_1 = arith.constant 0 : index
    %c0_2 = arith.constant 0 : index
    %1 = vector.load %arg2[%c0_1, %c0_2] : memref<32x128xbf16, #tpu.memory_space<vmem>>, vector<32x128xbf16>
    %cst = arith.constant dense<0.000000e+00> : vector<8x128xf32>
    %2 = tpu.matmul %0, %1, %cst {dimension_numbers = #tpu.dot_dimension_numbers<[1], [0], [0], [1], [0, 0, 1, 1], [], []>} : vector<8x32xbf16>, vector<32x128xbf16>, vector<8x128xf32> -> vector<8x128xf32>
    %c0_3 = arith.constant 0 : index
    %c0_4 = arith.constant 0 : index
    %3 = vector.load %arg3[%c0_3, %c0_4] : memref<1x128xf32, #tpu.memory_space<vmem>>, vector<1x128xf32>
    %4 = vector.broadcast %3 : vector<1x128xf32> to vector<8x128xf32>
    %5 = arith.addf %2, %4 : vector<8x128xf32>
    %6 = vector.extract_strided_slice %5 {offsets = [0, 0], sizes = [8, 32], strides = [1, 1]} : vector<8x128xf32> to vector<8x32xf32>
    %7 = arith.truncf %6 : vector<8x32xf32> to vector<8x32xbf16>
    %c0_5 = arith.constant 0 : index
    %c0_6 = arith.constant 0 : index
    %8 = vector.load %arg4[%c0_5, %c0_6] : memref<8x32xbf16, #tpu.memory_space<vmem>>, vector<8x32xbf16>
    tpu.vector_store %arg4[%c0_5, %c0_6], %7 {strides = array<i32>} : memref<8x32xbf16, #tpu.memory_space<vmem>>, vector<8x32xbf16>,
    return
  }
  func.func @transform_0(%arg0: i32) -> (i32, i32) {
    %c0_i32 = arith.constant 0 : i32
    %c0_i32_0 = arith.constant 0 : i32
    return %arg0, %c0_i32 : i32, i32
  }
  func.func @transform_1(%arg0: i32) -> (i32, i32) {
    %c0_i32 = arith.constant 0 : i32
    %c0_i32_0 = arith.constant 0 : i32
    %c0_i32_1 = arith.constant 0 : i32
    return %c0_i32, %c0_i32_0 : i32, i32
  }
  func.func @transform_2(%arg0: i32) -> (i32, i32) {
    %c0_i32 = arith.constant 0 : i32
    %c0_i32_0 = arith.constant 0 : i32
    %c0_i32_1 = arith.constant 0 : i32
    return %c0_i32, %c0_i32_0 : i32, i32
  }
  func.func @transform_3(%arg0: i32) -> (i32, i32) {
    %c0_i32 = arith.constant 0 : i32
    %c0_i32_0 = arith.constant 0 : i32
    return %arg0, %c0_i32 : i32, i32
  }
}

</mosaic_0001>

<llo_original>
// kernel: tpu_custom_call.1
$region0: #{tpu_custom_call.1}
  #allocation0 [shape = 'u32[]', space=smem, size = 0x4, offset = 0x4, fixed_abs, tag = 'smem constant byte address 0x4 - core index']
  #allocation1 [shape = 'u32[144,128]{1,0:T(1,128)}', space=vmem, size = 0x12000, scoped, tag = 'internal scratch']
  %s0 = inlined_call_operand.hbm [shape: f32[16,128], index: 0, kind: input, shape index: {}]
  %s1 = inlined_call_operand.hbm [shape: f32[8,128], index: 1, kind: input, shape index: {}]
  %s2 = inlined_call_operand.hbm [shape: f32[16,128], index: 2, kind: output, shape index: {}]
  %s3 = sld [smem:[#allocation0]]
  $region49: #{tpu_custom_call.1} parent=0
    _
  %s5 = ssub.s32 1, %s3
  %s6 = scalar_select 0, %s5, %s3
  $region1: #{tpu_custom_call.1} parent=0
    #allocation2 [shape = 'u8[8192]{0}', space=vmem, size = 0x2000, scoped, tag = 'input window, operand 0']
    #allocation3 [shape = 's32[2]{0}', space=sflag, size = 0x8, scoped, tag = 'scoped memory for tpu_custom_call.1']
    #allocation4 [shape = 's32[2]{0}', space=sflag, size = 0x8, scoped, tag = 'scoped memory for tpu_custom_call.1']
    #allocation5 [shape = 'u8[4096]{0}', space=vmem, size = 0x1000, scoped, tag = 'input window, operand 1, single buffered']
    #allocation6 [shape = 's32[1]{0}', space=sflag, size = 0x4, scoped, tag = 'scoped memory for tpu_custom_call.1']
    #allocation7 [shape = 'u8[8192]{0}', space=vmem, size = 0x2000, scoped, tag = 'output window, operand 0']
    %7 = vsyncpa [#allocation3], 0
    %s8 = scalar_lea.sflag [#allocation3], 1
    %9 = vsyncpa %s8, 0
    %10 = vsyncpa [#allocation6], 0
    %11 = vsyncpa [#allocation4], 0
    %s12 = scalar_lea.sflag [#allocation4], 1
    %13 = vsyncpa %s12, 0
    loop: start=0, step=1, limit=4
    $region2: #{tpu_custom_call.1} parent=1 // loop_pre_header
      _
    $region3: #{tpu_custom_call.1} parent=1 // loop_header
      %s15 = sphi 0, %s19
      %p16 = scmp.ge.s32.totalorder %s15, 4
      %s25 = sphi 0, %s27
      %s28 = sphi 0, %s25
      %s29 = sphi 0, %s28
      %s45 = sphi 0, %s29
      %s49 = sphi 0, %s49
      %s51 = sphi 0, %s49
      %s52 = sphi 0, %s51
      %s66 = sphi 0, %s52
      %s72 = sphi 0, %s74
      %s75 = sphi 0, %s72
      %s76 = sphi 0, %s75
      %s92 = sphi 0, %s76
    $region4: #{tpu_custom_call.1} parent=1 // loop_header_branch
      %18 = sbr.rel (%p16) target = $region8
    $region5: #{tpu_custom_call.1} parent=1 // loop_body
      %s20 = ssub.s32 %s15, 1
      %s21 = ssub.s32 %s15, 2
      %s22 = sadd.s32 %s15, 1
      %s23 = ssub.s32 %s15, %s22
      %p24 = scmp.eq.s32.totalorder %s23, 0
      %s26 = sadd.s32 %s25, 1
      %s27 = scalar_select %p24, %s25, %s26
      %p30 = pneg %p24
      %p31 = scmp.eq.s32.totalorder %s15, 1
      %p32 = por %p30, %p31
      %p33 = scmp.ne.s32.totalorder %s25, %s28
      %p34 = scmp.eq.s32.totalorder %s15, 0
      %p35 = por %p33, %p34
      %p36 = scmp.ne.s32.totalorder %s25, %s28
      %p37 = scmp.eq.s32.totalorder %s20, 1
      %p38 = por %p36, %p37
      %p39 = scmp.ne.s32.totalorder %s28, %s29
      %p40 = scmp.eq.s32.totalorder %s20, 0
      %p41 = por %p39, %p40
      %p42 = scmp.ne.s32.totalorder %s28, %s29
      %p43 = scmp.eq.s32.totalorder %s21, 1
      %p44 = por %p42, %p43
      %p46 = scmp.ne.s32.totalorder %s29, %s45
      %p47 = scmp.eq.s32.totalorder %s21, 0
      %p48 = por %p46, %p47
      %s50 = sadd.s32 %s49, 1
      %p53 = scmp.eq.s32.totalorder %s15, 1
      %p54 = scmp.ne.s32.totalorder %s49, %s51
      %p55 = scmp.eq.s32.totalorder %s15, 0
      %p56 = por %p54, %p55
      %p57 = scmp.ne.s32.totalorder %s49, %s51
      %p58 = scmp.eq.s32.totalorder %s20, 1
      %p59 = por %p57, %p58
      %p60 = scmp.ne.s32.totalorder %s51, %s52
      %p61 = scmp.eq.s32.totalorder %s20, 0
      %p62 = por %p60, %p61
      %p63 = scmp.ne.s32.totalorder %s51, %s52
      %p64 = scmp.eq.s32.totalorder %s21, 1
      %p65 = por %p63, %p64
      %p67 = scmp.ne.s32.totalorder %s52, %s66
      %p68 = scmp.eq.s32.totalorder %s21, 0
      %p69 = por %p67, %p68
      %s70 = ssub.s32 %s15, %s22
      %p71 = scmp.eq.s32.totalorder %s70, 0
      %s73 = sadd.s32 %s72, 1
      %s74 = scalar_select %p71, %s72, %s73
      %p77 = pneg %p71
      %p78 = scmp.eq.s32.totalorder %s15, 1
      %p79 = por %p77, %p78
      %p80 = scmp.ne.s32.totalorder %s72, %s75
      %p81 = scmp.eq.s32.totalorder %s15, 0
      %p82 = por %p80, %p81
      %p83 = scmp.ne.s32.totalorder %s72, %s75
      %p84 = scmp.eq.s32.totalorder %s20, 1
      %p85 = por %p83, %p84
      %p86 = scmp.ne.s32.totalorder %s75, %s76
      %p87 = scmp.eq.s32.totalorder %s20, 0
      %p88 = por %p86, %p87
      %p89 = scmp.ne.s32.totalorder %s75, %s76
      %p90 = scmp.eq.s32.totalorder %s21, 1
      %p91 = por %p89, %p90
      %p93 = scmp.ne.s32.totalorder %s76, %s92
      %p94 = scmp.eq.s32.totalorder %s21, 0
      %p95 = por %p93, %p94
      %p96 = scmp.le.s32.totalorder 1, %s15
      %p97 = scmp.lt.s32.totalorder %s15, 3
      %p98 = pnand %p96, %p97
      %p99 = pneg %p98
      // Predicated region
      $region9: #{tpu_custom_call.1} parent=5 // pred_check
        _
      $region10: #{tpu_custom_call.1} parent=5 // pred_check_branch
        %101 = sbr.rel (%p98) target = $region12
      $region11: #{tpu_custom_call.1} parent=5 // pred_region
        %s102 = ssub.s32 %s15, 1
        // Predicated region
        $region13: #{tpu_custom_call.1} parent=11 // pred_check
          %p103 = pneg %p62
        $region14: #{tpu_custom_call.1} parent=11 // pred_check_branch
          %105 = sbr.rel (%p103) target = $region16
        $region15: #{tpu_custom_call.1} parent=11 // pred_region
          %s107 = ssub.s32 128, 128
          %108 = vsyncadd [#allocation6], %s107
          %s110 = sshll.u32 [#allocation5], 4
          %s111 = int_to_ptr.vmem [resolvable:$true] %s110
          %113 = dma.hbm_to_vmem [thread:$0]  %s1, 128, %s111, [#allocation6]
        $region16: #{tpu_custom_call.1} parent=11 // pred_fallthru
          _
      $region12: #{tpu_custom_call.1} parent=5 // pred_fallthru
        _
      %p114 = scmp.lt.s32.totalorder %s15, 2
      // Predicated region
      $region17: #{tpu_custom_call.1} parent=5 // pred_check
        %p115 = pneg %p114
      $region18: #{tpu_custom_call.1} parent=5 // pred_check_branch
        %117 = sbr.rel (%p115) target = $region20
      $region19: #{tpu_custom_call.1} parent=5 // pred_region
        // Predicated region
        $region21: #{tpu_custom_call.1} parent=19 // pred_check
          %p118 = pneg %p35
        $region22: #{tpu_custom_call.1} parent=19 // pred_check_branch
          %120 = sbr.rel (%p118) target = $region24
        $region23: #{tpu_custom_call.1} parent=19 // pred_region
          %s121 = sand.u32 %s25, 1
          %s122 = scalar_lea.sflag [#allocation3], %s121
          %s123 = sand.u32 %s25, 1
          %s124 = smul.addr %s123, 8
          %s125 = scalar_lea.vmem [#allocation2], %s124
          %s127 = ssub.s32 128, 128
          %128 = vsyncadd %s122, %s127
          %s129 = smul.addr %s15, 128
          %s130 = scalar_lea.hbm %s0, %s129
          %s132 = sshll.u32 %s125, 4
          %s133 = int_to_ptr.vmem [resolvable:$true] %s132
          %135 = dma.hbm_to_vmem [thread:$0]  %s130, 128, %s133, %s122
        $region24: #{tpu_custom_call.1} parent=19 // pred_fallthru
          _
      $region20: #{tpu_custom_call.1} parent=5 // pred_fallthru
        _
      %p136 = scmp.le.s32.totalorder 1, %s15
      %p137 = scmp.lt.s32.totalorder %s15, 3
      %p138 = pnand %p136, %p137
      %p139 = pneg %p138
      // Predicated region
      $region25: #{tpu_custom_call.1} parent=5 // pred_check
        _
      $region26: #{tpu_custom_call.1} parent=5 // pred_check_branch
        %141 = sbr.rel (%p138) target = $region28
      $region27: #{tpu_custom_call.1} parent=5 // pred_region
        %s142 = ssub.s32 %s15, 1
        %s143 = sand.u32 %s28, 1
        %s144 = scalar_lea.sflag [#allocation3], %s143
        %s145 = sand.u32 %s28, 1
        %s146 = smul.addr %s145, 8
        %s147 = scalar_lea.vmem [#allocation2], %s146
        // Predicated region
        $region29: #{tpu_custom_call.1} parent=27 // pred_check
          %p148 = pneg %p41
        $region30: #{tpu_custom_call.1} parent=27 // pred_check_branch
          %150 = sbr.rel (%p148) target = $region32
        $region31: #{tpu_custom_call.1} parent=27 // pred_region
          %151 = dma.done %s144, 128
        $region32: #{tpu_custom_call.1} parent=27 // pred_fallthru
          _
        // Predicated region
        $region33: #{tpu_custom_call.1} parent=27 // pred_check
          %p152 = pneg %p62
        $region34: #{tpu_custom_call.1} parent=27 // pred_check_branch
          %154 = sbr.rel (%p152) target = $region36
        $region35: #{tpu_custom_call.1} parent=27 // pred_region
          %155 = dma.done [#allocation6], 128
        $region36: #{tpu_custom_call.1} parent=27 // pred_fallthru
          _
        %s156 = sand.u32 %s28, 1
        %s157 = scalar_lea.sflag [#allocation3], %s156
        %s158 = sand.u32 %s28, 1
        %s159 = smul.addr %s158, 8
        %s160 = scalar_lea.vmem [#allocation2], %s159
        %p161 = pneg %p41
        %p162 = pneg %p38
        %p163 = pneg %p62
        %p164 = pneg %p59
        %p165 = pneg %p88
        %p166 = pneg %p85
        %s167 = sand.u32 %s75, 1
        %s168 = scalar_lea.sflag [#allocation4], %s167
        %s169 = sand.u32 %s75, 1
        %s170 = smul.addr %s169, 8
        %s171 = scalar_lea.vmem [#allocation7], %s170
        %v172 = vld [vmem:[%s147] sm:$0xff]
        %v173 = vld [vmem:[#allocation5] sm:$0xff]
        %v174 = vadd.f32 %v172, %v173
        %175 = vst [vmem:[%s171] sm:$0xff] %v174
        %s176 = sand.u32 %s75, 1
        %s177 = scalar_lea.sflag [#allocation4], %s176
        %s178 = sand.u32 %s75, 1
        %s179 = smul.addr %s178, 8
        %s180 = scalar_lea.vmem [#allocation7], %s179
        // Predicated region
        $region37: #{tpu_custom_call.1} parent=27 // pred_check
          %p181 = pneg %p85
        $region38: #{tpu_custom_call.1} parent=27 // pred_check_branch
          %183 = sbr.rel (%p181) target = $region40
        $region39: #{tpu_custom_call.1} parent=27 // pred_region
          %s185 = ssub.s32 128, 128
          %186 = vsyncadd %s177, %s185
          %s187 = smul.addr %s20, 128
          %s188 = scalar_lea.hbm %s2, %s187
          %s190 = sshll.u32 %s180, 4
          %s191 = int_to_ptr.vmem [resolvable:$true] %s190
          %193 = dma.vmem_to_hbm [thread:$0]  %s191, 128, %s188, %s177
        $region40: #{tpu_custom_call.1} parent=27 // pred_fallthru
          _
      $region28: #{tpu_custom_call.1} parent=5 // pred_fallthru
        _
      %p194 = scmp.le.s32.totalorder 2, %s15
      // Predicated region
      $region41: #{tpu_custom_call.1} parent=5 // pred_check
        %p195 = pneg %p194
      $region42: #{tpu_custom_call.1} parent=5 // pred_check_branch
        %197 = sbr.rel (%p195) target = $region44
      $region43: #{tpu_custom_call.1} parent=5 // pred_region
        %s198 = ssub.s32 %s15, 2
        // Predicated region
        $region45: #{tpu_custom_call.1} parent=43 // pred_check
          %p199 = pneg %p91
        $region46: #{tpu_custom_call.1} parent=43 // pred_check_branch
          %201 = sbr.rel (%p199) target = $region48
        $region47: #{tpu_custom_call.1} parent=43 // pred_region
          %s202 = sand.u32 %s76, 1
          %s203 = scalar_lea.sflag [#allocation4], %s202
          %s204 = sand.u32 %s76, 1
          %s205 = smul.addr %s204, 8
          %s206 = scalar_lea.vmem [#allocation7], %s205
          %207 = dma.done %s203, 128
        $region48: #{tpu_custom_call.1} parent=43 // pred_fallthru
          _
      $region44: #{tpu_custom_call.1} parent=5 // pred_fallthru
        _
    $region6: #{tpu_custom_call.1} parent=1 // loop_footer
      %s19 = sadd.s32 1, %s15
    $region7: #{tpu_custom_call.1} parent=1 // loop_footer_branch
      %14 = sbr.rel target = $region3
    $region8: #{tpu_custom_call.1} parent=1 // loop_exit
      _
    %208 = vsyncpa [#allocation3], 1
    %s209 = scalar_lea.sflag [#allocation3], 1
    %210 = vsyncpa %s209, 1
    %211 = vsyncpa [#allocation6], 1
    %212 = vsyncpa [#allocation4], 1
    %s213 = scalar_lea.sflag [#allocation4], 1
    %214 = vsyncpa %s213, 1

// kernel: _perm_equi2_mean_impl.1
$region0: #{_perm_equi2_mean_impl.1}
  #allocation0 [shape = 'u32[]', space=smem, size = 0x4, offset = 0x4, fixed_abs, tag = 'smem constant byte address 0x4 - core index']
  #allocation1 [shape = 'u32[144,128]{1,0:T(1,128)}', space=vmem, size = 0x12000, scoped, tag = 'internal scratch']
  %s0 = inlined_call_operand.vmem [shape: bf16[8,32], index: 0, kind: input, shape index: {}]
  %s1 = inlined_call_operand.vmem [shape: bf16[32,128], index: 1, kind: input, shape index: {}]
  %s2 = inlined_call_operand.vmem [shape: f32[1,128], index: 2, kind: input, shape index: {}]
  %s3 = inlined_call_operand.hbm [shape: bf16[8,32], index: 3, kind: output, shape index: {}]
  %s4 = sld [smem:[#allocation0]]
  $region22: #{_perm_equi2_mean_impl.1} parent=0
    _
  %s6 = ssub.s32 1, %s4
  %s7 = scalar_select 0, %s6, %s4
  $region1: #{_perm_equi2_mean_impl.1} parent=0
    #allocation2 [shape = 'u8[2048]{0}', space=vmem, size = 0x800, scoped, tag = 'output window, operand 0, single buffered']
    #allocation3 [shape = 's32[1]{0}', space=sflag, size = 0x4, scoped, tag = 'scoped memory for _perm_equi2_mean_impl.1']
    %8 = vsyncpa [#allocation3], 0
    // Predicated region
    $region2: #{_perm_equi2_mean_impl.1} parent=1 // pred_check
      _
    $region3: #{_perm_equi2_mean_impl.1} parent=1 // pred_check_branch
      %10 = sbr.rel (0) target = $region5
    $region4: #{_perm_equi2_mean_impl.1} parent=1 // pred_region
      _
    $region5: #{_perm_equi2_mean_impl.1} parent=1 // pred_fallthru
      _
    // Predicated region
    $region6: #{_perm_equi2_mean_impl.1} parent=1 // pred_check
      _
    $region7: #{_perm_equi2_mean_impl.1} parent=1 // pred_check_branch
      %12 = sbr.rel (0) target = $region9
    $region8: #{_perm_equi2_mean_impl.1} parent=1 // pred_region
      _
    $region9: #{_perm_equi2_mean_impl.1} parent=1 // pred_fallthru
      _
    // Predicated region
    $region10: #{_perm_equi2_mean_impl.1} parent=1 // pred_check
      _
    $region11: #{_perm_equi2_mean_impl.1} parent=1 // pred_check_branch
      %14 = sbr.rel (0) target = $region13
    $region12: #{_perm_equi2_mean_impl.1} parent=1 // pred_region
      _
    $region13: #{_perm_equi2_mean_impl.1} parent=1 // pred_fallthru
      _
    %v16 = vld [vmem:[%s0] sm:$0xf]
    %v17 = vld [vmem:[%s1] sm:$0xf]
    %v18 = vld [vmem:[%s1 + $0x4] sm:$0xf]
    %v19 = vld [vmem:[%s1 + $0x8] sm:$0xf]
    %v20 = vld [vmem:[%s1 + $0xc] sm:$0xf]
    %v21 = vld [vmem:[%s2] sm:$0x1]
    %v23 = vlaneseq
    %v24 = vshrl.u32 %v23, 7
    %v25 = vsub.s32 0, %v24
    %v26 = vrot.slane %v21, %v25
    %v32 = vunpack.c.l.b16 %v17
    %v33 = vunpack.c.l.b16 %v18
    %v34 = vunpack.c.l.b16 %v19
    %v35 = vunpack.c.l.b16 %v20
    %v36 = vpack.c.b16 %v33, %v32
    %v37 = vpack.c.b16 %v35, %v34
    %vm40 = vcmask 261120
    %v42 = vsel %vm40, %v16, 0
    %44 = vmatprep.subr.bf16.mxu0 0
    %45 = vmatpush1.bf16.msra.mxu0 %v36
    %46 = vmatprep.subr.bf16.mxu0 0
    %47 = vmatpush1.bf16.msra.mxu0 %v37
    %48 = vmatprep.subr.bf16.mxu0 0
    %49 = vmatpush1.bf16.msra.mxu0 0
    %50 = vmatprep.subr.bf16.mxu0 0
    %51 = vmatpush1.bf16.msra.mxu0 0
    %52 = vmatprep.subr.bf16.mxu0 0
    %53 = vmatpush1.bf16.msra.mxu0 0
    %54 = vmatprep.subr.bf16.mxu0 0
    %55 = vmatpush1.bf16.msra.mxu0 0
    %56 = vmatprep.subr.bf16.mxu0 0
    %57 = vmatpush1.bf16.msra.mxu0 0
    %58 = vmatprep.subr.bf16.mxu0 0
    %59 = vmatpush1.bf16.msra.mxu0 0
    %60 = vmatprep.subr.bf16.mxu0 0
    %61 = vmatpush1.bf16.msra.mxu0 0
    %62 = vmatprep.subr.bf16.mxu0 0
    %63 = vmatpush1.bf16.msra.mxu0 0
    %64 = vmatprep.subr.bf16.mxu0 0
    %65 = vmatpush1.bf16.msra.mxu0 0
    %66 = vmatprep.subr.bf16.mxu0 0
    %67 = vmatpush1.bf16.msra.mxu0 0
    %68 = vmatprep.subr.bf16.mxu0 0
    %69 = vmatpush1.bf16.msra.mxu0 0
    %70 = vmatprep.subr.bf16.mxu0 0
    %71 = vmatpush1.bf16.msra.mxu0 0
    %72 = vmatprep.subr.bf16.mxu0 0
    %73 = vmatpush1.bf16.msra.mxu0 0
    %74 = vmatprep.subr.bf16.mxu0 0
    %75 = vmatpush1.bf16.msra.mxu0 0
    %76 = vmatprep.mubr.bf16.mxu0 0
    %77 = vmatmul.mubr.bf16.gmra.mrb[0].mxu0 %v42
    %v78 = vpop.f32.mrb[0].mxu0
    %v79 = vadd.f32 %v26, %v78
    %v80 = vpop.f32.mrb[0].mxu0
    %v81 = vpop.f32.mrb[0].mxu0
    %v82 = vpop.f32.mrb[0].mxu0
    %83 = vdwg.mxu0
    %v84 = vpack.c.bf16 %v79, %v79
    %vm85 = vcmask 257024
    %86 = vst.msk [vmem:[#allocation2] sm:$0xf] %vm85, %v84
    // Predicated region
    $region14: #{_perm_equi2_mean_impl.1} parent=1 // pred_check
      _
    $region15: #{_perm_equi2_mean_impl.1} parent=1 // pred_check_branch
      %88 = sbr.rel (0) target = $region17
    $region16: #{_perm_equi2_mean_impl.1} parent=1 // pred_region
      %s90 = ssub.s32 64, 64
      %91 = vsyncadd [#allocation3], %s90
      %s93 = sshll.u32 [#allocation2], 4
      %s94 = int_to_ptr.vmem [resolvable:$true] %s93
      %96 = dma.vmem_to_hbm [thread:$0]  %s94, 64, %s3, [#allocation3]
    $region17: #{_perm_equi2_mean_impl.1} parent=1 // pred_fallthru
      _
    // Predicated region
    $region18: #{_perm_equi2_mean_impl.1} parent=1 // pred_check
      _
    $region19: #{_perm_equi2_mean_impl.1} parent=1 // pred_check_branch
      %98 = sbr.rel (0) target = $region21
    $region20: #{_perm_equi2_mean_impl.1} parent=1 // pred_region
      %99 = dma.done [#allocation3], 64
    $region21: #{_perm_equi2_mean_impl.1} parent=1 // pred_fallthru
      _
    %100 = vsyncpa [#allocation3], 1

</llo_original>
